<compile_context>
chip_gen: v7x
topology: tpu7x:2x2x1
jax: 0.10.0
libtpu: 0.0.40
codegen_flags: <defaults>
</compile_context>

<pallas_src>
import jax
import jax.numpy as jnp
from jax.experimental import pallas as pl
from jax.experimental.pallas import tpu as pltpu


def _make_seg_head_kernel(num_features, channels, use_vpu_predict):
    """Kernel factory. Refs: num_features feature tiles, then w1, w2, b2, out."""
    C = channels

    def kernel(*refs):
        feat_refs = refs[:num_features]              # each [C, TM] (batch squeezed)
        w1_ref, w2_ref, b2_ref, o_ref = refs[num_features:]
        # w1_ref: [F, C, C]   w2_ref: [NC, C]   b2_ref: [NC, 1]
        tm = feat_refs[0].shape[-1]

        # dense1: y1[C, TM] = sum_i W1_i[C, C] @ feat_i[C, TM]   (MXU, f32 accum)
        # Inputs may be bf16; upcast in VMEM (exact) so all math is f32
        # (v5e has no bf16 VALU/EUP, and it keeps numerics identical to the
        # f32 reference).
        y1 = jnp.zeros((C, tm), jnp.float32)
        for i in range(num_features):
            x_i = feat_refs[i][...].astype(jnp.float32)
            y1 = y1 + jnp.dot(w1_ref[i], x_i, preferred_element_type=jnp.float32)

        # lif1 fire (threshold = 1.0, membrane starts at 0)
        spk1 = (y1 > 1.0).astype(jnp.float32)        # [C, TM]

        # predict: y2[NC, TM] = W2 @ spk1 + b2
        if use_vpu_predict:
            # K = C is tiny: unrolled broadcast FMAs on the VPU instead of
            # paying MXU push/pop latency for a 4x3 matmul.
            w2 = w2_ref[...]                          # [NC, C]
            y2 = b2_ref[...]                          # [NC, 1] broadcasts in the adds
            for c in range(C):
                y2 = y2 + w2[:, c:c + 1] * spk1[c:c + 1, :]
        else:
            y2 = jnp.dot(w2_ref[...], spk1,
                         preferred_element_type=jnp.float32) + b2_ref[...]

        # lif2 fire; spikes are exactly 0/1 so the narrow-dtype store is lossless.
        o_ref[...] = (y2 > 1.0).astype(o_ref.dtype)

    return kernel


def _pick_tm(HW, B, tile_pixels):
    """Pick a lane-dense pixel tile without any pad/slice HBM round-trips."""
    tm_cap = max(128, (int(tile_pixels) // 128) * 128)
    if B < 2 and HW > 256:
        # Keep at least 2 pixel tiles so both v7x TensorCores get work.
        half = max(128, ((HW // 2 + 127) // 128) * 128)
        tm_cap = min(tm_cap, half)
    if HW <= 128:
        return HW                       # full-extent tiny block (only option)
    if HW % 128 == 0 and HW <= tm_cap:
        return HW                       # single lane-dense block per batch
    # Multiple-of-128 tile; a ragged last tile is handled by Pallas partial blocks.
    return min(tm_cap, max(128, (HW // 128) * 128))


def segmentation_head(features, w1, w2, b2, *, tile_pixels=32768, out_dtype=None):
    """features: list of num_features arrays, each [B, C, H, W] (NCHW), any float dtype
                 (pass bf16 to halve the dominant HBM input traffic).
    w1: [C, C*num_features]   dense1 weight (PyTorch conv weight squeezed over 1x1 dims)
    w2: [num_classes, C]      predict weight
    b2: [num_classes]         predict bias
    Returns spk2 as [B, num_classes, H, W] in `out_dtype` (default: feature dtype).
    """
    num_features = len(features)
    B, C, H, W = features[0].shape
    Cin = C * num_features
    NC = w2.shape[0]
    assert w1.shape == (C, Cin), f"w1 must be [C, C*F]=({C},{Cin}), got {w1.shape}"
    assert w2.shape == (NC, C), f"w2 must be [NC, C], got {w2.shape}"
    assert b2.shape == (NC,), f"b2 must be [NC], got {b2.shape}"

    HW = H * W
    if out_dtype is None:
        out_dtype = features[0].dtype
    # Free reshape (no copy, no dtype change): NCHW -> [B, C, H*W], channel-major.
    feats = [f.reshape(B, C, HW) for f in features]

    tm = _pick_tm(HW, B, tile_pixels)
    n_pix_tiles = pl.cdiv(HW, tm)

    # Tiny parameter arrays, kept f32 and resident in VMEM via constant index maps.
    # w1 -> [F, C, C] so each per-feature weight is a whole leading-dim slice.
    w1_f = w1.astype(jnp.float32).reshape(C, num_features, C).transpose(1, 0, 2)
    w2_f = w2.astype(jnp.float32)
    b2_col = b2.astype(jnp.float32).reshape(NC, 1)

    kernel = _make_seg_head_kernel(num_features, C, use_vpu_predict=(C <= 32))

    feat_spec = pl.BlockSpec((pl.Squeezed(), C, tm), lambda b, p: (b, 0, p))
    in_specs = [feat_spec] * num_features + [
        pl.BlockSpec((num_features, C, C), lambda b, p: (0, 0, 0)),  # w1 resident
        pl.BlockSpec((NC, C), lambda b, p: (0, 0)),                  # w2 resident
        pl.BlockSpec((NC, 1), lambda b, p: (0, 0)),                  # b2 resident
    ]
    out_spec = pl.BlockSpec((pl.Squeezed(), NC, tm), lambda b, p: (b, 0, p))

    out = pl.pallas_call(
        kernel,
        out_shape=jax.ShapeDtypeStruct((B, NC, HW), out_dtype),
        grid_spec=pltpu.PrefetchScalarGridSpec(
            num_scalar_prefetch=0,
            grid=(B, n_pix_tiles),
            in_specs=in_specs,
            out_specs=out_spec,
        ),
        compiler_params=pltpu.CompilerParams(
            dimension_semantics=("parallel", "parallel"),
            # At tm=32768: bf16 inputs are 4 x 256 KiB x 2 buffers = 2 MiB
            # (f32: 4 MiB) + output double-buffer; comfortably inside 32 MiB,
            # which also overrides v5e's 16 MiB scoped default and leaves
            # headroom on v7x's 64 MiB physical VMEM.
            vmem_limit_bytes=32 * 1024 * 1024,
        ),
    )(*feats, w1_f, w2_f, b2_col)

    return out.reshape(B, NC, H, W)    # already NCHW - no transpose back needed


def _reference(features, w1, w2, b2):
    x = jnp.concatenate([f.astype(jnp.float32) for f in features], axis=1)
    y1 = jnp.einsum("bchw,dc->bdhw", x, w1.astype(jnp.float32))
    spk1 = (y1 > 1.0).astype(jnp.float32)
    y2 = (jnp.einsum("bchw,dc->bdhw", spk1, w2.astype(jnp.float32))
          + b2.astype(jnp.float32)[None, :, None, None])
    return (y2 > 1.0).astype(jnp.float32)


if __name__ == "__main__":
    key = jax.random.PRNGKey(0)
    B, C, H, W = 2, 4, 16, 16
    num_features = 4
    num_classes = 3
    Cin = C * num_features

    k_feat, k_w1, k_w2, k_b2 = jax.random.split(key, 4)
    feat_keys = jax.random.split(k_feat, num_features)
    # bf16 feature maps (native streaming dtype): halves the dominant HBM input
    # traffic; the kernel upcasts to f32 in VMEM, so math matches the f32 reference
    # computed from the same bf16 values.
    features = [
        (jax.random.normal(k, (B, C, H, W), dtype=jnp.float32) * 2.0).astype(jnp.bfloat16)
        for k in feat_keys
    ]

    # Parameters (deterministic, synthetic).  PyTorch conv weights are
    # [Cout, Cin, 1, 1]; here they are used squeezed to [Cout, Cin].
    w1 = jax.random.normal(k_w1, (C, Cin), dtype=jnp.float32) * 0.5     # dense1 (no bias)
    w2 = jax.random.normal(k_w2, (num_classes, C), dtype=jnp.float32)   # predict weight
    b2 = jax.random.normal(k_b2, (num_classes,), dtype=jnp.float32)     # predict bias

    spk2 = segmentation_head(features, w1, w2, b2)
    spk2 = jax.block_until_ready(spk2)

    ref = _reference(features, w1, w2, b2)
    assert spk2.shape == (B, num_classes, H, W), spk2.shape
    # Spikes are exact 0/1; allow only a vanishing flip rate from matmul
    # accumulation-order differences right at the 1.0 threshold.
    flip_frac = float(jnp.mean(jnp.abs(spk2.astype(jnp.float32) - ref)))
    assert flip_frac <= 2e-3, f"spike mismatch fraction {flip_frac}"

    print("KERNEL_OK")
</pallas_src>

<mosaic_0001>
module attributes {stable_mosaic.version = 11 : i64} {
  func.func @kernel(%arg0: i32, %arg1: i32, %arg2: memref<1x4x256xbf16, #tpu.memory_space<vmem>>, %arg3: memref<1x4x256xbf16, #tpu.memory_space<vmem>>, %arg4: memref<1x4x256xbf16, #tpu.memory_space<vmem>>, %arg5: memref<1x4x256xbf16, #tpu.memory_space<vmem>>, %arg6: memref<4x4x4xf32, #tpu.memory_space<vmem>>, %arg7: memref<3x4xf32, #tpu.memory_space<vmem>>, %arg8: memref<3x1xf32, #tpu.memory_space<vmem>>, %arg9: memref<1x3x256xbf16, #tpu.memory_space<vmem>>) attributes {dimension_semantics = [#tpu.dimension_semantics<parallel>, #tpu.dimension_semantics<parallel>], iteration_bounds = array<i64: 2, 1>, scalar_prefetch = 0 : i64, scratch_operands = 0 : i64, tpu.core_type = #tpu.core_type<tc>, window_params = [{transform_indices = @transform_0, window_bounds = array<i64: 1, 4, 256>}, {transform_indices = @transform_1, window_bounds = array<i64: 1, 4, 256>}, {transform_indices = @transform_2, window_bounds = array<i64: 1, 4, 256>}, {transform_indices = @transform_3, window_bounds = array<i64: 1, 4, 256>}, {pipeline_mode = #tpu.pipeline_mode<synchronous>, transform_indices = @transform_4, window_bounds = array<i64: 4, 4, 4>}, {pipeline_mode = #tpu.pipeline_mode<synchronous>, transform_indices = @transform_5, window_bounds = array<i64: 3, 4>}, {pipeline_mode = #tpu.pipeline_mode<synchronous>, transform_indices = @transform_6, window_bounds = array<i64: 3, 1>}, {transform_indices = @transform_7, window_bounds = array<i64: 1, 3, 256>}]} {
    %cst = arith.constant 0.000000e+00 : f32
    %0 = vector.broadcast %cst : f32 to vector<4x256xf32>
    %c0 = arith.constant 0 : index
    %c0_0 = arith.constant 0 : index
    %c0_1 = arith.constant 0 : index
    %1 = vector.load %arg2[%c0, %c0_0, %c0_1] : memref<1x4x256xbf16, #tpu.memory_space<vmem>>, vector<1x4x256xbf16>
    %2 = vector.shape_cast %1 : vector<1x4x256xbf16> to vector<4x256xbf16>
    %3 = arith.extf %2 : vector<4x256xbf16> to vector<4x256xf32>
    %c0_2 = arith.constant 0 : index
    %c0_3 = arith.constant 0 : index
    %c0_4 = arith.constant 0 : index
    %4 = vector.load %arg6[%c0_2, %c0_3, %c0_4] : memref<4x4x4xf32, #tpu.memory_space<vmem>>, vector<1x4x4xf32>
    %5 = vector.shape_cast %4 : vector<1x4x4xf32> to vector<4x4xf32>
    %cst_5 = arith.constant dense<0.000000e+00> : vector<4x256xf32>
    %6 = tpu.matmul %5, %3, %cst_5 {dimension_numbers = #tpu.dot_dimension_numbers<[1], [0], [0], [1], [0, 0, 1, 1], [], []>} : vector<4x4xf32>, vector<4x256xf32>, vector<4x256xf32> -> vector<4x256xf32>
    %7 = arith.addf %0, %6 : vector<4x256xf32>
    %c0_6 = arith.constant 0 : index
    %c0_7 = arith.constant 0 : index
    %c0_8 = arith.constant 0 : index
    %8 = vector.load %arg3[%c0_6, %c0_7, %c0_8] : memref<1x4x256xbf16, #tpu.memory_space<vmem>>, vector<1x4x256xbf16>
    %9 = vector.shape_cast %8 : vector<1x4x256xbf16> to vector<4x256xbf16>
    %10 = arith.extf %9 : vector<4x256xbf16> to vector<4x256xf32>
    %c1 = arith.constant 1 : index
    %c0_9 = arith.constant 0 : index
    %c0_10 = arith.constant 0 : index
    %11 = vector.load %arg6[%c1, %c0_9, %c0_10] : memref<4x4x4xf32, #tpu.memory_space<vmem>>, vector<1x4x4xf32>
    %12 = vector.shape_cast %11 : vector<1x4x4xf32> to vector<4x4xf32>
    %cst_11 = arith.constant dense<0.000000e+00> : vector<4x256xf32>
    %13 = tpu.matmul %12, %10, %cst_11 {dimension_numbers = #tpu.dot_dimension_numbers<[1], [0], [0], [1], [0, 0, 1, 1], [], []>} : vector<4x4xf32>, vector<4x256xf32>, vector<4x256xf32> -> vector<4x256xf32>
    %14 = arith.addf %7, %13 : vector<4x256xf32>
    %c0_12 = arith.constant 0 : index
    %c0_13 = arith.constant 0 : index
    %c0_14 = arith.constant 0 : index
    %15 = vector.load %arg4[%c0_12, %c0_13, %c0_14] : memref<1x4x256xbf16, #tpu.memory_space<vmem>>, vector<1x4x256xbf16>
    %16 = vector.shape_cast %15 : vector<1x4x256xbf16> to vector<4x256xbf16>
    %17 = arith.extf %16 : vector<4x256xbf16> to vector<4x256xf32>
    %c2 = arith.constant 2 : index
    %c0_15 = arith.constant 0 : index
    %c0_16 = arith.constant 0 : index
    %18 = vector.load %arg6[%c2, %c0_15, %c0_16] : memref<4x4x4xf32, #tpu.memory_space<vmem>>, vector<1x4x4xf32>
    %19 = vector.shape_cast %18 : vector<1x4x4xf32> to vector<4x4xf32>
    %cst_17 = arith.constant dense<0.000000e+00> : vector<4x256xf32>
    %20 = tpu.matmul %19, %17, %cst_17 {dimension_numbers = #tpu.dot_dimension_numbers<[1], [0], [0], [1], [0, 0, 1, 1], [], []>} : vector<4x4xf32>, vector<4x256xf32>, vector<4x256xf32> -> vector<4x256xf32>
    %21 = arith.addf %14, %20 : vector<4x256xf32>
    %c0_18 = arith.constant 0 : index
    %c0_19 = arith.constant 0 : index
    %c0_20 = arith.constant 0 : index
    %22 = vector.load %arg5[%c0_18, %c0_19, %c0_20] : memref<1x4x256xbf16, #tpu.memory_space<vmem>>, vector<1x4x256xbf16>
    %23 = vector.shape_cast %22 : vector<1x4x256xbf16> to vector<4x256xbf16>
    %24 = arith.extf %23 : vector<4x256xbf16> to vector<4x256xf32>
    %c3 = arith.constant 3 : index
    %c0_21 = arith.constant 0 : index
    %c0_22 = arith.constant 0 : index
    %25 = vector.load %arg6[%c3, %c0_21, %c0_22] : memref<4x4x4xf32, #tpu.memory_space<vmem>>, vector<1x4x4xf32>
    %26 = vector.shape_cast %25 : vector<1x4x4xf32> to vector<4x4xf32>
    %cst_23 = arith.constant dense<0.000000e+00> : vector<4x256xf32>
    %27 = tpu.matmul %26, %24, %cst_23 {dimension_numbers = #tpu.dot_dimension_numbers<[1], [0], [0], [1], [0, 0, 1, 1], [], []>} : vector<4x4xf32>, vector<4x256xf32>, vector<4x256xf32> -> vector<4x256xf32>
    %28 = arith.addf %21, %27 : vector<4x256xf32>
    %cst_24 = arith.constant 1.000000e+00 : f32
    %29 = vector.broadcast %cst_24 : f32 to vector<4x256xf32>
    %30 = arith.cmpf ogt, %28, %29 : vector<4x256xf32>
    %31 = arith.extui %30 : vector<4x256xi1> to vector<4x256xi32>
    %32 = arith.sitofp %31 : vector<4x256xi32> to vector<4x256xf32>
    %c0_25 = arith.constant 0 : index
    %c0_26 = arith.constant 0 : index
    %33 = vector.load %arg7[%c0_25, %c0_26] : memref<3x4xf32, #tpu.memory_space<vmem>>, vector<3x4xf32>
    %c0_27 = arith.constant 0 : index
    %c0_28 = arith.constant 0 : index
    %34 = vector.load %arg8[%c0_27, %c0_28] : memref<3x1xf32, #tpu.memory_space<vmem>>, vector<3x1xf32>
    %35 = vector.extract_strided_slice %33 {offsets = [0, 0], sizes = [3, 1], strides = [1, 1]} : vector<3x4xf32> to vector<3x1xf32>
    %36 = vector.extract_strided_slice %32 {offsets = [0, 0], sizes = [1, 256], strides = [1, 1]} : vector<4x256xf32> to vector<1x256xf32>
    %37 = vector.broadcast %35 : vector<3x1xf32> to vector<3x256xf32>
    %38 = vector.broadcast %36 : vector<1x256xf32> to vector<3x256xf32>
    %39 = arith.mulf %37, %38 : vector<3x256xf32>
    %40 = vector.broadcast %34 : vector<3x1xf32> to vector<3x256xf32>
    %41 = arith.addf %40, %39 : vector<3x256xf32>
    %42 = vector.extract_strided_slice %33 {offsets = [0, 1], sizes = [3, 1], strides = [1, 1]} : vector<3x4xf32> to vector<3x1xf32>
    %43 = vector.extract_strided_slice %32 {offsets = [1, 0], sizes = [1, 256], strides = [1, 1]} : vector<4x256xf32> to vector<1x256xf32>
    %44 = vector.broadcast %42 : vector<3x1xf32> to vector<3x256xf32>
    %45 = vector.broadcast %43 : vector<1x256xf32> to vector<3x256xf32>
    %46 = arith.mulf %44, %45 : vector<3x256xf32>
    %47 = arith.addf %41, %46 : vector<3x256xf32>
    %48 = vector.extract_strided_slice %33 {offsets = [0, 2], sizes = [3, 1], strides = [1, 1]} : vector<3x4xf32> to vector<3x1xf32>
    %49 = vector.extract_strided_slice %32 {offsets = [2, 0], sizes = [1, 256], strides = [1, 1]} : vector<4x256xf32> to vector<1x256xf32>
    %50 = vector.broadcast %48 : vector<3x1xf32> to vector<3x256xf32>
    %51 = vector.broadcast %49 : vector<1x256xf32> to vector<3x256xf32>
    %52 = arith.mulf %50, %51 : vector<3x256xf32>
    %53 = arith.addf %47, %52 : vector<3x256xf32>
    %54 = vector.extract_strided_slice %33 {offsets = [0, 3], sizes = [3, 1], strides = [1, 1]} : vector<3x4xf32> to vector<3x1xf32>
    %55 = vector.extract_strided_slice %32 {offsets = [3, 0], sizes = [1, 256], strides = [1, 1]} : vector<4x256xf32> to vector<1x256xf32>
    %56 = vector.broadcast %54 : vector<3x1xf32> to vector<3x256xf32>
    %57 = vector.broadcast %55 : vector<1x256xf32> to vector<3x256xf32>
    %58 = arith.mulf %56, %57 : vector<3x256xf32>
    %59 = arith.addf %53, %58 : vector<3x256xf32>
    %cst_29 = arith.constant 1.000000e+00 : f32
    %60 = vector.broadcast %cst_29 : f32 to vector<3x256xf32>
    %61 = arith.cmpf ogt, %59, %60 : vector<3x256xf32>
    %62 = arith.extui %61 : vector<3x256xi1> to vector<3x256xi32>
    %63 = arith.sitofp %62 : vector<3x256xi32> to vector<3x256xf32>
    %64 = arith.truncf %63 : vector<3x256xf32> to vector<3x256xbf16>
    %c0_30 = arith.constant 0 : index
    %c0_31 = arith.constant 0 : index
    %c0_32 = arith.constant 0 : index
    %65 = vector.load %arg9[%c0_30, %c0_31, %c0_32] : memref<1x3x256xbf16, #tpu.memory_space<vmem>>, vector<1x3x256xbf16>
    %66 = vector.shape_cast %65 : vector<1x3x256xbf16> to vector<3x256xbf16>
    %67 = vector.shape_cast %64 : vector<3x256xbf16> to vector<1x3x256xbf16>
    tpu.vector_store %arg9[%c0_30, %c0_31, %c0_32], %67 {strides = array<i32>} : memref<1x3x256xbf16, #tpu.memory_space<vmem>>, vector<1x3x256xbf16>,
    return
  }
  func.func @transform_0(%arg0: i32, %arg1: i32) -> (i32, i32, i32) {
    %c0_i32 = arith.constant 0 : i32
    %c0_i32_0 = arith.constant 0 : i32
    return %arg0, %c0_i32, %arg1 : i32, i32, i32
  }
  func.func @transform_1(%arg0: i32, %arg1: i32) -> (i32, i32, i32) {
    %c0_i32 = arith.constant 0 : i32
    %c0_i32_0 = arith.constant 0 : i32
    return %arg0, %c0_i32, %arg1 : i32, i32, i32
  }
  func.func @transform_2(%arg0: i32, %arg1: i32) -> (i32, i32, i32) {
    %c0_i32 = arith.constant 0 : i32
    %c0_i32_0 = arith.constant 0 : i32
    return %arg0, %c0_i32, %arg1 : i32, i32, i32
  }
  func.func @transform_3(%arg0: i32, %arg1: i32) -> (i32, i32, i32) {
    %c0_i32 = arith.constant 0 : i32
    %c0_i32_0 = arith.constant 0 : i32
    return %arg0, %c0_i32, %arg1 : i32, i32, i32
  }
  func.func @transform_4(%arg0: i32, %arg1: i32) -> (i32, i32, i32) {
    %c0_i32 = arith.constant 0 : i32
    %c0_i32_0 = arith.constant 0 : i32
    %c0_i32_1 = arith.constant 0 : i32
    %c0_i32_2 = arith.constant 0 : i32
    return %c0_i32, %c0_i32_0, %c0_i32_1 : i32, i32, i32
  }
  func.func @transform_5(%arg0: i32, %arg1: i32) -> (i32, i32) {
    %c0_i32 = arith.constant 0 : i32
    %c0_i32_0 = arith.constant 0 : i32
    %c0_i32_1 = arith.constant 0 : i32
    return %c0_i32, %c0_i32_0 : i32, i32
  }
  func.func @transform_6(%arg0: i32, %arg1: i32) -> (i32, i32) {
    %c0_i32 = arith.constant 0 : i32
    %c0_i32_0 = arith.constant 0 : i32
    %c0_i32_1 = arith.constant 0 : i32
    return %c0_i32, %c0_i32_0 : i32, i32
  }
  func.func @transform_7(%arg0: i32, %arg1: i32) -> (i32, i32, i32) {
    %c0_i32 = arith.constant 0 : i32
    %c0_i32_0 = arith.constant 0 : i32
    return %arg0, %c0_i32, %arg1 : i32, i32, i32
  }
}

</mosaic_0001>

<llo_original>
// kernel: tpu_custom_call.1
$region0: #{tpu_custom_call.1}
  #allocation0 [shape = 'u32[]', space=smem, size = 0x4, offset = 0x4, fixed_abs, tag = 'smem constant byte address 0x4 - core index']
  #allocation1 [shape = 'u32[144,128]{1,0:T(1,128)}', space=vmem, size = 0x12000, scoped, tag = 'internal scratch']
  %s0 = inlined_call_operand.hbm [shape: bf16[2,4,256], index: 0, kind: input, shape index: {}]
  %s1 = inlined_call_operand.hbm [shape: bf16[2,4,256], index: 1, kind: input, shape index: {}]
  %s2 = inlined_call_operand.hbm [shape: bf16[2,4,256], index: 2, kind: input, shape index: {}]
  %s3 = inlined_call_operand.hbm [shape: bf16[2,4,256], index: 3, kind: input, shape index: {}]
  %s4 = inlined_call_operand.vmem [shape: f32[4,4,4], index: 4, kind: input, shape index: {}]
  %s5 = inlined_call_operand.vmem [shape: f32[3,4], index: 5, kind: input, shape index: {}]
  %s6 = inlined_call_operand.vmem [shape: f32[3,1], index: 6, kind: input, shape index: {}]
  %s7 = inlined_call_operand.vmem [shape: bf16[2,3,256], index: 7, kind: output, shape index: {}]
  %s8 = sld [smem:[#allocation0]]
  $region77: #{tpu_custom_call.1} parent=0
    _
  %s10 = ssub.s32 1, %s8
  %s11 = scalar_select 0, %s10, %s8
  $region1: #{tpu_custom_call.1} parent=0
    #allocation2 [shape = 'u8[4096]{0}', space=vmem, size = 0x1000, scoped, tag = 'input window, operand 0']
    #allocation3 [shape = 's32[2]{0}', space=sflag, size = 0x8, scoped, tag = 'scoped memory for tpu_custom_call.1']
    #allocation4 [shape = 'u8[4096]{0}', space=vmem, size = 0x1000, scoped, tag = 'input window, operand 1']
    #allocation5 [shape = 's32[2]{0}', space=sflag, size = 0x8, scoped, tag = 'scoped memory for tpu_custom_call.1']
    #allocation6 [shape = 'u8[4096]{0}', space=vmem, size = 0x1000, scoped, tag = 'input window, operand 2']
    #allocation7 [shape = 'u8[4096]{0}', space=vmem, size = 0x1000, scoped, tag = 'input window, operand 3']
    #allocation8 [shape = 's32[2]{0}', space=sflag, size = 0x8, scoped, tag = 'scoped memory for tpu_custom_call.1']
    %12 = vsyncpa [#allocation3], 0
    %s13 = scalar_lea.sflag [#allocation3], 1
    %14 = vsyncpa %s13, 0
    %15 = vsyncpa [#allocation5], 0
    %s16 = scalar_lea.sflag [#allocation5], 1
    %17 = vsyncpa %s16, 0
    %18 = vsyncpa [#allocation8], 0
    %s19 = scalar_lea.sflag [#allocation8], 1
    %20 = vsyncpa %s19, 0
    loop: start=0, step=1, limit=4
    $region2: #{tpu_custom_call.1} parent=1 // loop_pre_header
      _
    $region3: #{tpu_custom_call.1} parent=1 // loop_header
      %s22 = sphi 0, %s26
      %p23 = scmp.ge.s32.totalorder %s22, 4
      %s29 = sphi 0, %s41
      %s30 = sphi 0, %s37
      %s31 = sphi 0, %s29
      %s32 = sphi 0, %s30
      %s33 = sphi 0, %s31
      %s34 = sphi 0, %s32
      %s46 = sphi 0, %s48
      %s49 = sphi 0, %s46
      %s50 = sphi 0, %s49
      %s66 = sphi 0, %s50
      %s74 = sphi 0, %s76
      %s77 = sphi 0, %s74
      %s78 = sphi 0, %s77
      %s94 = sphi 0, %s78
      %s102 = sphi 0, %s104
      %s105 = sphi 0, %s102
      %s106 = sphi 0, %s105
      %s122 = sphi 0, %s106
      %s130 = sphi 0, %s132
      %s133 = sphi 0, %s130
      %s134 = sphi 0, %s133
      %s150 = sphi 0, %s134
      %s154 = sphi 0, %s154
      %s156 = sphi 0, %s154
      %s157 = sphi 0, %s156
      %s171 = sphi 0, %s157
      %s175 = sphi 0, %s175
      %s177 = sphi 0, %s175
      %s178 = sphi 0, %s177
      %s192 = sphi 0, %s178
      %s196 = sphi 0, %s196
      %s198 = sphi 0, %s196
      %s199 = sphi 0, %s198
      %s213 = sphi 0, %s199
      %s221 = sphi 0, %s223
      %s224 = sphi 0, %s221
      %s225 = sphi 0, %s224
      %s241 = sphi 0, %s225
    $region4: #{tpu_custom_call.1} parent=1 // loop_header_branch
      %25 = sbr.rel (%p23) target = $region8
    $region5: #{tpu_custom_call.1} parent=1 // loop_body
      %s27 = ssub.s32 %s22, 1
      %s28 = ssub.s32 %s22, 2
      %s35 = sadd.s32 1, %s30
      %p36 = scmp.ge.s32.totalorder %s35, 1
      %s37 = scalar_select %p36, 0, %s35
      %s38 = sadd.s32 1, %s29
      %s39 = scalar_select %p36, %s38, %s29
      %p40 = scmp.ge.s32.totalorder %s39, 2
      %s41 = scalar_select %p40, 0, %s39
      %s42 = ssub.s32 %s29, %s41
      %s43 = ssub.s32 %s30, %s37
      %s44 = sor.u32 %s42, %s43
      %p45 = scmp.eq.s32.totalorder %s44, 0
      %s47 = sadd.s32 %s46, 1
      %s48 = scalar_select %p45, %s46, %s47
      %p51 = pneg %p45
      %p52 = scmp.eq.s32.totalorder %s22, 1
      %p53 = por %p51, %p52
      %p54 = scmp.ne.s32.totalorder %s46, %s49
      %p55 = scmp.eq.s32.totalorder %s22, 0
      %p56 = por %p54, %p55
      %p57 = scmp.ne.s32.totalorder %s46, %s49
      %p58 = scmp.eq.s32.totalorder %s27, 1
      %p59 = por %p57, %p58
      %p60 = scmp.ne.s32.totalorder %s49, %s50
      %p61 = scmp.eq.s32.totalorder %s27, 0
      %p62 = por %p60, %p61
      %p63 = scmp.ne.s32.totalorder %s49, %s50
      %p64 = scmp.eq.s32.totalorder %s28, 1
      %p65 = por %p63, %p64
      %p67 = scmp.ne.s32.totalorder %s50, %s66
      %p68 = scmp.eq.s32.totalorder %s28, 0
      %p69 = por %p67, %p68
      %s70 = ssub.s32 %s29, %s41
      %s71 = ssub.s32 %s30, %s37
      %s72 = sor.u32 %s70, %s71
      %p73 = scmp.eq.s32.totalorder %s72, 0
      %s75 = sadd.s32 %s74, 1
      %s76 = scalar_select %p73, %s74, %s75
      %p79 = pneg %p73
      %p80 = scmp.eq.s32.totalorder %s22, 1
      %p81 = por %p79, %p80
      %p82 = scmp.ne.s32.totalorder %s74, %s77
      %p83 = scmp.eq.s32.totalorder %s22, 0
      %p84 = por %p82, %p83
      %p85 = scmp.ne.s32.totalorder %s74, %s77
      %p86 = scmp.eq.s32.totalorder %s27, 1
      %p87 = por %p85, %p86
      %p88 = scmp.ne.s32.totalorder %s77, %s78
      %p89 = scmp.eq.s32.totalorder %s27, 0
      %p90 = por %p88, %p89
      %p91 = scmp.ne.s32.totalorder %s77, %s78
      %p92 = scmp.eq.s32.totalorder %s28, 1
      %p93 = por %p91, %p92
      %p95 = scmp.ne.s32.totalorder %s78, %s94
      %p96 = scmp.eq.s32.totalorder %s28, 0
      %p97 = por %p95, %p96
      %s98 = ssub.s32 %s29, %s41
      %s99 = ssub.s32 %s30, %s37
      %s100 = sor.u32 %s98, %s99
      %p101 = scmp.eq.s32.totalorder %s100, 0
      %s103 = sadd.s32 %s102, 1
      %s104 = scalar_select %p101, %s102, %s103
      %p107 = pneg %p101
      %p108 = scmp.eq.s32.totalorder %s22, 1
      %p109 = por %p107, %p108
      %p110 = scmp.ne.s32.totalorder %s102, %s105
      %p111 = scmp.eq.s32.totalorder %s22, 0
      %p112 = por %p110, %p111
      %p113 = scmp.ne.s32.totalorder %s102, %s105
      %p114 = scmp.eq.s32.totalorder %s27, 1
      %p115 = por %p113, %p114
      %p116 = scmp.ne.s32.totalorder %s105, %s106
      %p117 = scmp.eq.s32.totalorder %s27, 0
      %p118 = por %p116, %p117
      %p119 = scmp.ne.s32.totalorder %s105, %s106
      %p120 = scmp.eq.s32.totalorder %s28, 1
      %p121 = por %p119, %p120
      %p123 = scmp.ne.s32.totalorder %s106, %s122
      %p124 = scmp.eq.s32.totalorder %s28, 0
      %p125 = por %p123, %p124
      %s126 = ssub.s32 %s29, %s41
      %s127 = ssub.s32 %s30, %s37
      %s128 = sor.u32 %s126, %s127
      %p129 = scmp.eq.s32.totalorder %s128, 0
      %s131 = sadd.s32 %s130, 1
      %s132 = scalar_select %p129, %s130, %s131
      %p135 = pneg %p129
      %p136 = scmp.eq.s32.totalorder %s22, 1
      %p137 = por %p135, %p136
      %p138 = scmp.ne.s32.totalorder %s130, %s133
      %p139 = scmp.eq.s32.totalorder %s22, 0
      %p140 = por %p138, %p139
      %p141 = scmp.ne.s32.totalorder %s130, %s133
      %p142 = scmp.eq.s32.totalorder %s27, 1
      %p143 = por %p141, %p142
      %p144 = scmp.ne.s32.totalorder %s133, %s134
      %p145 = scmp.eq.s32.totalorder %s27, 0
      %p146 = por %p144, %p145
      %p147 = scmp.ne.s32.totalorder %s133, %s134
      %p148 = scmp.eq.s32.totalorder %s28, 1
      %p149 = por %p147, %p148
      %p151 = scmp.ne.s32.totalorder %s134, %s150
      %p152 = scmp.eq.s32.totalorder %s28, 0
      %p153 = por %p151, %p152
      %s155 = sadd.s32 %s154, 1
      %p158 = scmp.eq.s32.totalorder %s22, 1
      %p159 = scmp.ne.s32.totalorder %s154, %s156
      %p160 = scmp.eq.s32.totalorder %s22, 0
      %p161 = por %p159, %p160
      %p162 = scmp.ne.s32.totalorder %s154, %s156
      %p163 = scmp.eq.s32.totalorder %s27, 1
      %p164 = por %p162, %p163
      %p165 = scmp.ne.s32.totalorder %s156, %s157
      %p166 = scmp.eq.s32.totalorder %s27, 0
      %p167 = por %p165, %p166
      %p168 = scmp.ne.s32.totalorder %s156, %s157
      %p169 = scmp.eq.s32.totalorder %s28, 1
      %p170 = por %p168, %p169
      %p172 = scmp.ne.s32.totalorder %s157, %s171
      %p173 = scmp.eq.s32.totalorder %s28, 0
      %p174 = por %p172, %p173
      %s176 = sadd.s32 %s175, 1
      %p179 = scmp.eq.s32.totalorder %s22, 1
      %p180 = scmp.ne.s32.totalorder %s175, %s177
      %p181 = scmp.eq.s32.totalorder %s22, 0
      %p182 = por %p180, %p181
      %p183 = scmp.ne.s32.totalorder %s175, %s177
      %p184 = scmp.eq.s32.totalorder %s27, 1
      %p185 = por %p183, %p184
      %p186 = scmp.ne.s32.totalorder %s177, %s178
      %p187 = scmp.eq.s32.totalorder %s27, 0
      %p188 = por %p186, %p187
      %p189 = scmp.ne.s32.totalorder %s177, %s178
      %p190 = scmp.eq.s32.totalorder %s28, 1
      %p191 = por %p189, %p190
      %p193 = scmp.ne.s32.totalorder %s178, %s192
      %p194 = scmp.eq.s32.totalorder %s28, 0
      %p195 = por %p193, %p194
      %s197 = sadd.s32 %s196, 1
      %p200 = scmp.eq.s32.totalorder %s22, 1
      %p201 = scmp.ne.s32.totalorder %s196, %s198
      %p202 = scmp.eq.s32.totalorder %s22, 0
      %p203 = por %p201, %p202
      %p204 = scmp.ne.s32.totalorder %s196, %s198
      %p205 = scmp.eq.s32.totalorder %s27, 1
      %p206 = por %p204, %p205
      %p207 = scmp.ne.s32.totalorder %s198, %s199
      %p208 = scmp.eq.s32.totalorder %s27, 0
      %p209 = por %p207, %p208
      %p210 = scmp.ne.s32.totalorder %s198, %s199
      %p211 = scmp.eq.s32.totalorder %s28, 1
      %p212 = por %p210, %p211
      %p214 = scmp.ne.s32.totalorder %s199, %s213
      %p215 = scmp.eq.s32.totalorder %s28, 0
      %p216 = por %p214, %p215
      %s217 = ssub.s32 %s29, %s41
      %s218 = ssub.s32 %s30, %s37
      %s219 = sor.u32 %s217, %s218
      %p220 = scmp.eq.s32.totalorder %s219, 0
      %s222 = sadd.s32 %s221, 1
      %s223 = scalar_select %p220, %s221, %s222
      %p226 = pneg %p220
      %p227 = scmp.eq.s32.totalorder %s22, 1
      %p228 = por %p226, %p227
      %p229 = scmp.ne.s32.totalorder %s221, %s224
      %p230 = scmp.eq.s32.totalorder %s22, 0
      %p231 = por %p229, %p230
      %p232 = scmp.ne.s32.totalorder %s221, %s224
      %p233 = scmp.eq.s32.totalorder %s27, 1
      %p234 = por %p232, %p233
      %p235 = scmp.ne.s32.totalorder %s224, %s225
      %p236 = scmp.eq.s32.totalorder %s27, 0
      %p237 = por %p235, %p236
      %p238 = scmp.ne.s32.totalorder %s224, %s225
      %p239 = scmp.eq.s32.totalorder %s28, 1
      %p240 = por %p238, %p239
      %p242 = scmp.ne.s32.totalorder %s225, %s241
      %p243 = scmp.eq.s32.totalorder %s28, 0
      %p244 = por %p242, %p243
      %p245 = scmp.le.s32.totalorder 1, %s22
      %p246 = scmp.lt.s32.totalorder %s22, 3
      %p247 = pnand %p245, %p246
      %p248 = pneg %p247
      // Predicated region
      $region9: #{tpu_custom_call.1} parent=5 // pred_check
        _
      $region10: #{tpu_custom_call.1} parent=5 // pred_check_branch
        %250 = sbr.rel (%p247) target = $region12
      $region11: #{tpu_custom_call.1} parent=5 // pred_region
        %s251 = ssub.s32 %s22, 1
        // Predicated region
        $region13: #{tpu_custom_call.1} parent=11 // pred_check
          %p252 = pneg %p167
        $region14: #{tpu_custom_call.1} parent=11 // pred_check_branch
          %254 = sbr.rel (%p252) target = $region16
        $region15: #{tpu_custom_call.1} parent=11 // pred_region
          _
        $region16: #{tpu_custom_call.1} parent=11 // pred_fallthru
          _
        // Predicated region
        $region17: #{tpu_custom_call.1} parent=11 // pred_check
          %p255 = pneg %p188
        $region18: #{tpu_custom_call.1} parent=11 // pred_check_branch
          %257 = sbr.rel (%p255) target = $region20
        $region19: #{tpu_custom_call.1} parent=11 // pred_region
          _
        $region20: #{tpu_custom_call.1} parent=11 // pred_fallthru
          _
        // Predicated region
        $region21: #{tpu_custom_call.1} parent=11 // pred_check
          %p258 = pneg %p209
        $region22: #{tpu_custom_call.1} parent=11 // pred_check_branch
          %260 = sbr.rel (%p258) target = $region24
        $region23: #{tpu_custom_call.1} parent=11 // pred_region
          _
        $region24: #{tpu_custom_call.1} parent=11 // pred_fallthru
          _
      $region12: #{tpu_custom_call.1} parent=5 // pred_fallthru
        _
      %p261 = scmp.lt.s32.totalorder %s22, 2
      // Predicated region
      $region25: #{tpu_custom_call.1} parent=5 // pred_check
        %p262 = pneg %p261
      $region26: #{tpu_custom_call.1} parent=5 // pred_check_branch
        %264 = sbr.rel (%p262) target = $region28
      $region27: #{tpu_custom_call.1} parent=5 // pred_region
        // Predicated region
        $region29: #{tpu_custom_call.1} parent=27 // pred_check
          %p265 = pneg %p56
        $region30: #{tpu_custom_call.1} parent=27 // pred_check_branch
          %267 = sbr.rel (%p265) target = $region32
        $region31: #{tpu_custom_call.1} parent=27 // pred_region
          %s268 = sand.u32 %s46, 1
          %s269 = scalar_lea.sflag [#allocation3], %s268
          %s270 = sand.u32 %s46, 1
          %s271 = smul.addr %s270, 4
          %s272 = scalar_lea.vmem [#allocation2], %s271
          %s273 = smul.u32 2, %s30
          %s275 = ssub.s32 64, 64
          %276 = vsyncadd %s269, %s275
          %s277 = smul.addr %s29, 2
          %s278 = sadd.s32 %s273, %s277
          %s279 = smul.addr %s278, 32
          %s280 = scalar_lea.hbm %s0, %s279
          %s282 = sshll.u32 %s272, 4
          %s283 = int_to_ptr.vmem [resolvable:$true] %s282
          %285 = dma.hbm_to_vmem [thread:$0]  %s280, 64, %s283, %s269
        $region32: #{tpu_custom_call.1} parent=27 // pred_fallthru
          _
        // Predicated region
        $region33: #{tpu_custom_call.1} parent=27 // pred_check
          %p286 = pneg %p84
        $region34: #{tpu_custom_call.1} parent=27 // pred_check_branch
          %288 = sbr.rel (%p286) target = $region36
        $region35: #{tpu_custom_call.1} parent=27 // pred_region
          %s289 = sand.u32 %s22, 1
          %s290 = scalar_lea.sflag [#allocation5], %s289
          %s291 = sand.u32 %s74, 1
          %s292 = smul.addr %s291, 4
          %s293 = scalar_lea.vmem [#allocation4], %s292
          %s294 = smul.u32 2, %s30
          %s296 = ssub.s32 64, 64
          %297 = vsyncadd %s290, %s296
          %s298 = smul.addr %s29, 2
          %s299 = sadd.s32 %s294, %s298
          %s300 = smul.addr %s299, 32
          %s301 = scalar_lea.hbm %s1, %s300
          %s303 = sshll.u32 %s293, 4
          %s304 = int_to_ptr.vmem [resolvable:$true] %s303
          %306 = dma.hbm_to_vmem [thread:$0]  %s301, 64, %s304, %s290
        $region36: #{tpu_custom_call.1} parent=27 // pred_fallthru
          _
        // Predicated region
        $region37: #{tpu_custom_call.1} parent=27 // pred_check
          %p307 = pneg %p112
        $region38: #{tpu_custom_call.1} parent=27 // pred_check_branch
          %309 = sbr.rel (%p307) target = $region40
        $region39: #{tpu_custom_call.1} parent=27 // pred_region
          %s310 = sand.u32 %s22, 1
          %s311 = scalar_lea.sflag [#allocation5], %s310
          %s312 = sand.u32 %s102, 1
          %s313 = smul.addr %s312, 4
          %s314 = scalar_lea.vmem [#allocation6], %s313
          %s315 = smul.u32 2, %s30
          %s317 = ssub.s32 64, 64
          %318 = vsyncadd %s311, %s317
          %s319 = smul.addr %s29, 2
          %s320 = sadd.s32 %s315, %s319
          %s321 = smul.addr %s320, 32
          %s322 = scalar_lea.hbm %s2, %s321
          %s324 = sshll.u32 %s314, 4
          %s325 = int_to_ptr.vmem [resolvable:$true] %s324
          %327 = dma.hbm_to_vmem [thread:$0]  %s322, 64, %s325, %s311
        $region40: #{tpu_custom_call.1} parent=27 // pred_fallthru
          _
        // Predicated region
        $region41: #{tpu_custom_call.1} parent=27 // pred_check
          %p328 = pneg %p140
        $region42: #{tpu_custom_call.1} parent=27 // pred_check_branch
          %330 = sbr.rel (%p328) target = $region44
        $region43: #{tpu_custom_call.1} parent=27 // pred_region
          %s331 = sand.u32 %s130, 1
          %s332 = scalar_lea.sflag [#allocation8], %s331
          %s333 = sand.u32 %s130, 1
          %s334 = smul.addr %s333, 4
          %s335 = scalar_lea.vmem [#allocation7], %s334
          %s336 = smul.u32 2, %s30
          %s338 = ssub.s32 64, 64
          %339 = vsyncadd %s332, %s338
          %s340 = smul.addr %s29, 2
          %s341 = sadd.s32 %s336, %s340
          %s342 = smul.addr %s341, 32
          %s343 = scalar_lea.hbm %s3, %s342
          %s345 = sshll.u32 %s335, 4
          %s346 = int_to_ptr.vmem [resolvable:$true] %s345
          %348 = dma.hbm_to_vmem [thread:$0]  %s343, 64, %s346, %s332
        $region44: #{tpu_custom_call.1} parent=27 // pred_fallthru
          _
      $region28: #{tpu_custom_call.1} parent=5 // pred_fallthru
        _
      %p349 = scmp.le.s32.totalorder 1, %s22
      %p350 = scmp.lt.s32.totalorder %s22, 3
      %p351 = pnand %p349, %p350
      %p352 = pneg %p351
      // Predicated region
      $region45: #{tpu_custom_call.1} parent=5 // pred_check
        _
      $region46: #{tpu_custom_call.1} parent=5 // pred_check_branch
        %354 = sbr.rel (%p351) target = $region48
      $region47: #{tpu_custom_call.1} parent=5 // pred_region
        %s355 = ssub.s32 %s22, 1
        %s356 = sand.u32 %s49, 1
        %s357 = scalar_lea.sflag [#allocation3], %s356
        %s358 = sand.u32 %s49, 1
        %s359 = smul.addr %s358, 4
        %s360 = scalar_lea.vmem [#allocation2], %s359
        // Predicated region
        $region49: #{tpu_custom_call.1} parent=47 // pred_check
          %p361 = pneg %p62
        $region50: #{tpu_custom_call.1} parent=47 // pred_check_branch
          %363 = sbr.rel (%p361) target = $region52
        $region51: #{tpu_custom_call.1} parent=47 // pred_region
          %364 = dma.done %s357, 64
        $region52: #{tpu_custom_call.1} parent=47 // pred_fallthru
          _
        %s365 = sand.u32 %s27, 1
        %s366 = scalar_lea.sflag [#allocation5], %s365
        %s367 = sand.u32 %s77, 1
        %s368 = smul.addr %s367, 4
        %s369 = scalar_lea.vmem [#allocation4], %s368
        // Predicated region
        $region53: #{tpu_custom_call.1} parent=47 // pred_check
          %p370 = pneg %p90
        $region54: #{tpu_custom_call.1} parent=47 // pred_check_branch
          %372 = sbr.rel (%p370) target = $region56
        $region55: #{tpu_custom_call.1} parent=47 // pred_region
          %373 = dma.done %s366, 64
        $region56: #{tpu_custom_call.1} parent=47 // pred_fallthru
          _
        %s374 = sand.u32 %s27, 1
        %s375 = scalar_lea.sflag [#allocation5], %s374
        %s376 = sand.u32 %s105, 1
        %s377 = smul.addr %s376, 4
        %s378 = scalar_lea.vmem [#allocation6], %s377
        // Predicated region
        $region57: #{tpu_custom_call.1} parent=47 // pred_check
          %p379 = pneg %p118
        $region58: #{tpu_custom_call.1} parent=47 // pred_check_branch
          %381 = sbr.rel (%p379) target = $region60
        $region59: #{tpu_custom_call.1} parent=47 // pred_region
          %382 = dma.done %s375, 64
        $region60: #{tpu_custom_call.1} parent=47 // pred_fallthru
          _
        %s383 = sand.u32 %s133, 1
        %s384 = scalar_lea.sflag [#allocation8], %s383
        %s385 = sand.u32 %s133, 1
        %s386 = smul.addr %s385, 4
        %s387 = scalar_lea.vmem [#allocation7], %s386
        // Predicated region
        $region61: #{tpu_custom_call.1} parent=47 // pred_check
          %p388 = pneg %p146
        $region62: #{tpu_custom_call.1} parent=47 // pred_check_branch
          %390 = sbr.rel (%p388) target = $region64
        $region63: #{tpu_custom_call.1} parent=47 // pred_region
          %391 = dma.done %s384, 64
        $region64: #{tpu_custom_call.1} parent=47 // pred_fallthru
          _
        %s392 = sand.u32 %s49, 1
        %s393 = scalar_lea.sflag [#allocation3], %s392
        %s394 = sand.u32 %s49, 1
        %s395 = smul.addr %s394, 4
        %s396 = scalar_lea.vmem [#allocation2], %s395
        %p397 = pneg %p62
        %p398 = pneg %p59
        %s399 = sand.u32 %s27, 1
        %s400 = scalar_lea.sflag [#allocation5], %s399
        %s401 = sand.u32 %s77, 1
        %s402 = smul.addr %s401, 4
        %s403 = scalar_lea.vmem [#allocation4], %s402
        %p404 = pneg %p90
        %p405 = pneg %p87
        %s406 = sand.u32 %s27, 1
        %s407 = scalar_lea.sflag [#allocation5], %s406
        %s408 = sand.u32 %s105, 1
        %s409 = smul.addr %s408, 4
        %s410 = scalar_lea.vmem [#allocation6], %s409
        %p411 = pneg %p118
        %p412 = pneg %p115
        %s413 = sand.u32 %s133, 1
        %s414 = scalar_lea.sflag [#allocation8], %s413
        %s415 = sand.u32 %s133, 1
        %s416 = smul.addr %s415, 4
        %s417 = scalar_lea.vmem [#allocation7], %s416
        %p418 = pneg %p146
        %p419 = pneg %p143
        %p420 = pneg %p167
        %p421 = pneg %p164
        %p422 = pneg %p188
        %p423 = pneg %p185
        %p424 = pneg %p209
        %p425 = pneg %p206
        %p426 = pneg %p237
        %p427 = pneg %p234
        %s428 = smul.u32 2, %s32
        %p429 = scmp.lt.s32.totalorder %s31, 1
        %s430 = scalar_select %p429, %s31, 1
        %p431 = scmp.lt.s32.totalorder %s428, 1
        %s432 = scalar_select %p431, %s428, 1
        %s433 = smul.addr %s430, 2
        %s434 = sadd.s32 %s432, %s433
        %s435 = smul.addr %s434, 2
        %s436 = scalar_lea.vmem %s7, %s435
        %s437 = smul.u32 2, %s32
        %s438 = smul.u32 2, %s32
        %s439 = smul.u32 2, %s32
        %s440 = smul.u32 2, %s32
        %s441 = smul.u32 2, %s32
        %p442 = scmp.lt.s32.totalorder %s31, 1
        %s443 = scalar_select %p442, %s31, 1
        %p444 = scmp.lt.s32.totalorder %s441, 1
        %s445 = scalar_select %p444, %s441, 1
        %s446 = smul.addr %s443, 2
        %s447 = sadd.s32 %s445, %s446
        %s448 = smul.addr %s447, 2
        %s449 = scalar_lea.vmem %s7, %s448
        %s450 = smul.u32 2, %s32
        %v451 = vld [vmem:[%s360] sm:$0xf]
        %v452 = vunpack.c.l.bf16 %v451
        %v453 = vld [vmem:[%s4] sm:$0xf]
        %v454 = vld [vmem:[%s369] sm:$0xf]
        %v455 = vunpack.c.l.bf16 %v454
        %s456 = scalar_lea.vmem %s4, 4
        %v457 = vld [vmem:[%s456] sm:$0xf]
        %v459 = vcombine.high %v455, %v455
        %vm460 = vcmask 31744
        %v462 = vsel %vm460, %v457, 0
        %vm464 = vcmask 1043456
        %v465 = vsel %vm464, %v455, 0
        %v467 = vsel %vm464, %v459, 0
        %469 = vmatprep.subr.mxu0 %v467
        %470 = vmatpush1.msra.mxu0 %v465
        %471 = vmatprep.subr.mxu0 0.0
        %472 = vmatpush1.msra.mxu0 0.0
        %473 = vmatprep.subr.mxu0 0.0
        %474 = vmatpush1.msra.mxu0 0.0
        %475 = vmatprep.subr.mxu0 0.0
        %476 = vmatpush1.msra.mxu0 0.0
        %477 = vmatprep.subr.mxu0 0.0
        %478 = vmatpush1.msra.mxu0 0.0
        %479 = vmatprep.subr.mxu0 0.0
        %480 = vmatpush1.msra.mxu0 0.0
        %481 = vmatprep.subr.mxu0 0.0
        %482 = vmatpush1.msra.mxu0 0.0
        %483 = vmatprep.subr.mxu0 0.0
        %484 = vmatpush1.msra.mxu0 0.0
        %485 = vmatprep.subr.mxu0 0.0
        %486 = vmatpush1.msra.mxu0 0.0
        %487 = vmatprep.subr.mxu0 0.0
        %488 = vmatpush1.msra.mxu0 0.0
        %489 = vmatprep.subr.mxu0 0.0
        %490 = vmatpush1.msra.mxu0 0.0
        %491 = vmatprep.subr.mxu0 0.0
        %492 = vmatpush1.msra.mxu0 0.0
        %493 = vmatprep.subr.mxu0 0.0
        %494 = vmatpush1.msra.mxu0 0.0
        %495 = vmatprep.subr.mxu0 0.0
        %496 = vmatpush1.msra.mxu0 0.0
        %497 = vmatprep.subr.mxu0 0.0
        %498 = vmatpush1.msra.mxu0 0.0
        %499 = vmatprep.subr.mxu0 0.0
        %500 = vmatpush1.msra.mxu0 0.0
        %501 = vmatprep.subr.mxu0 0.0
        %502 = vmatpush1.msra.mxu0 0.0
        %503 = vmatprep.subr.mxu0 0.0
        %504 = vmatpush1.msra.mxu0 0.0
        %505 = vmatprep.subr.mxu0 0.0
        %506 = vmatpush1.msra.mxu0 0.0
        %507 = vmatprep.subr.mxu0 0.0
        %508 = vmatpush1.msra.mxu0 0.0
        %509 = vmatprep.subr.mxu0 0.0
        %510 = vmatpush1.msra.mxu0 0.0
        %511 = vmatprep.subr.mxu0 0.0
        %512 = vmatpush1.msra.mxu0 0.0
        %513 = vmatprep.subr.mxu0 0.0
        %514 = vmatpush1.msra.mxu0 0.0
        %515 = vmatprep.subr.mxu0 0.0
        %516 = vmatpush1.msra.mxu0 0.0
        %517 = vmatprep.subr.mxu0 0.0
        %518 = vmatpush1.msra.mxu0 0.0
        %519 = vmatprep.subr.mxu0 0.0
        %520 = vmatpush1.msra.mxu0 0.0
        %521 = vmatprep.subr.mxu0 0.0
        %522 = vmatpush1.msra.mxu0 0.0
        %523 = vmatprep.subr.mxu0 0.0
        %524 = vmatpush1.msra.mxu0 0.0
        %525 = vmatprep.subr.mxu0 0.0
        %526 = vmatpush1.msra.mxu0 0.0
        %527 = vmatprep.subr.mxu0 0.0
        %528 = vmatpush1.msra.mxu0 0.0
        %529 = vmatprep.subr.mxu0 0.0
        %530 = vmatpush1.msra.mxu0 0.0
        %531 = vmatprep.subr.mxu0 0.0
        %532 = vmatpush1.msra.mxu0 0.0
        %533 = vmatprep.mubr.f32.mxu0 0.0
        %534 = vmatmul.mubr.f32.gmra.mrb[0].mxu0 %v462
        %v535 = vpop.f32.mrb[0].mxu0
        %v536 = vadd.f32 0.0, %v535
        %v537 = vpop.f32.mrb[0].mxu0
        %v538 = vadd.f32 0.0, %v537
        %539 = vdwg.mxu0
        %v541 = vcombine.high %v452, %v452
        %v543 = vsel %vm460, %v453, 0
        %v545 = vsel %vm464, %v452, 0
        %v547 = vsel %vm464, %v541, 0
        %549 = vmatprep.subr.mxu0 %v547
        %550 = vmatpush1.msra.mxu0 %v545
        %551 = vmatprep.subr.mxu0 0.0
        %552 = vmatpush1.msra.mxu0 0.0
        %553 = vmatprep.subr.mxu0 0.0
        %554 = vmatpush1.msra.mxu0 0.0
        %555 = vmatprep.subr.mxu0 0.0
        %556 = vmatpush1.msra.mxu0 0.0
        %557 = vmatprep.subr.mxu0 0.0
        %558 = vmatpush1.msra.mxu0 0.0
        %559 = vmatprep.subr.mxu0 0.0
        %560 = vmatpush1.msra.mxu0 0.0
        %561 = vmatprep.subr.mxu0 0.0
        %562 = vmatpush1.msra.mxu0 0.0
        %563 = vmatprep.subr.mxu0 0.0
        %564 = vmatpush1.msra.mxu0 0.0
        %565 = vmatprep.subr.mxu0 0.0
        %566 = vmatpush1.msra.mxu0 0.0
        %567 = vmatprep.subr.mxu0 0.0
        %568 = vmatpush1.msra.mxu0 0.0
        %569 = vmatprep.subr.mxu0 0.0
        %570 = vmatpush1.msra.mxu0 0.0
        %571 = vmatprep.subr.mxu0 0.0
        %572 = vmatpush1.msra.mxu0 0.0
        %573 = vmatprep.subr.mxu0 0.0
        %574 = vmatpush1.msra.mxu0 0.0
        %575 = vmatprep.subr.mxu0 0.0
        %576 = vmatpush1.msra.mxu0 0.0
        %577 = vmatprep.subr.mxu0 0.0
        %578 = vmatpush1.msra.mxu0 0.0
        %579 = vmatprep.subr.mxu0 0.0
        %580 = vmatpush1.msra.mxu0 0.0
        %581 = vmatprep.subr.mxu0 0.0
        %582 = vmatpush1.msra.mxu0 0.0
        %583 = vmatprep.subr.mxu0 0.0
        %584 = vmatpush1.msra.mxu0 0.0
        %585 = vmatprep.subr.mxu0 0.0
        %586 = vmatpush1.msra.mxu0 0.0
        %587 = vmatprep.subr.mxu0 0.0
        %588 = vmatpush1.msra.mxu0 0.0
        %589 = vmatprep.subr.mxu0 0.0
        %590 = vmatpush1.msra.mxu0 0.0
        %591 = vmatprep.subr.mxu0 0.0
        %592 = vmatpush1.msra.mxu0 0.0
        %593 = vmatprep.subr.mxu0 0.0
        %594 = vmatpush1.msra.mxu0 0.0
        %595 = vmatprep.subr.mxu0 0.0
        %596 = vmatpush1.msra.mxu0 0.0
        %597 = vmatprep.subr.mxu0 0.0
        %598 = vmatpush1.msra.mxu0 0.0
        %599 = vmatprep.subr.mxu0 0.0
        %600 = vmatpush1.msra.mxu0 0.0
        %601 = vmatprep.subr.mxu0 0.0
        %602 = vmatpush1.msra.mxu0 0.0
        %603 = vmatprep.subr.mxu0 0.0
        %604 = vmatpush1.msra.mxu0 0.0
        %605 = vmatprep.subr.mxu0 0.0
        %606 = vmatpush1.msra.mxu0 0.0
        %607 = vmatprep.subr.mxu0 0.0
        %608 = vmatpush1.msra.mxu0 0.0
        %609 = vmatprep.subr.mxu0 0.0
        %610 = vmatpush1.msra.mxu0 0.0
        %611 = vmatprep.subr.mxu0 0.0
        %612 = vmatpush1.msra.mxu0 0.0
        %613 = vmatprep.mubr.f32.mxu0 0.0
        %614 = vmatmul.mubr.f32.gmra.mrb[0].mxu0 %v543
        %v615 = vpop.f32.mrb[0].mxu0
        %v616 = vadd.f32 %v536, %v615
        %v617 = vpop.f32.mrb[0].mxu0
        %v618 = vadd.f32 %v538, %v617
        %619 = vdwg.mxu0
        %v620 = vld [vmem:[%s378] sm:$0xf]
        %v621 = vunpack.c.l.bf16 %v620
        %s622 = scalar_lea.vmem %s4, 8
        %v623 = vld [vmem:[%s622] sm:$0xf]
        %v625 = vcombine.high %v621, %v621
        %v627 = vsel %vm460, %v623, 0
        %v629 = vsel %vm464, %v621, 0
        %v631 = vsel %vm464, %v625, 0
        %633 = vmatprep.subr.mxu0 %v631
        %634 = vmatpush1.msra.mxu0 %v629
        %635 = vmatprep.subr.mxu0 0.0
        %636 = vmatpush1.msra.mxu0 0.0
        %637 = vmatprep.subr.mxu0 0.0
        %638 = vmatpush1.msra.mxu0 0.0
        %639 = vmatprep.subr.mxu0 0.0
        %640 = vmatpush1.msra.mxu0 0.0
        %641 = vmatprep.subr.mxu0 0.0
        %642 = vmatpush1.msra.mxu0 0.0
        %643 = vmatprep.subr.mxu0 0.0
        %644 = vmatpush1.msra.mxu0 0.0
        %645 = vmatprep.subr.mxu0 0.0
        %646 = vmatpush1.msra.mxu0 0.0
        %647 = vmatprep.subr.mxu0 0.0
        %648 = vmatpush1.msra.mxu0 0.0
        %649 = vmatprep.subr.mxu0 0.0
        %650 = vmatpush1.msra.mxu0 0.0
        %651 = vmatprep.subr.mxu0 0.0
        %652 = vmatpush1.msra.mxu0 0.0
        %653 = vmatprep.subr.mxu0 0.0
        %654 = vmatpush1.msra.mxu0 0.0
        %655 = vmatprep.subr.mxu0 0.0
        %656 = vmatpush1.msra.mxu0 0.0
        %657 = vmatprep.subr.mxu0 0.0
        %658 = vmatpush1.msra.mxu0 0.0
        %659 = vmatprep.subr.mxu0 0.0
        %660 = vmatpush1.msra.mxu0 0.0
        %661 = vmatprep.subr.mxu0 0.0
        %662 = vmatpush1.msra.mxu0 0.0
        %663 = vmatprep.subr.mxu0 0.0
        %664 = vmatpush1.msra.mxu0 0.0
        %665 = vmatprep.subr.mxu0 0.0
        %666 = vmatpush1.msra.mxu0 0.0
        %667 = vmatprep.subr.mxu0 0.0
        %668 = vmatpush1.msra.mxu0 0.0
        %669 = vmatprep.subr.mxu0 0.0
        %670 = vmatpush1.msra.mxu0 0.0
        %671 = vmatprep.subr.mxu0 0.0
        %672 = vmatpush1.msra.mxu0 0.0
        %673 = vmatprep.subr.mxu0 0.0
        %674 = vmatpush1.msra.mxu0 0.0
        %675 = vmatprep.subr.mxu0 0.0
        %676 = vmatpush1.msra.mxu0 0.0
        %677 = vmatprep.subr.mxu0 0.0
        %678 = vmatpush1.msra.mxu0 0.0
        %679 = vmatprep.subr.mxu0 0.0
        %680 = vmatpush1.msra.mxu0 0.0
        %681 = vmatprep.subr.mxu0 0.0
        %682 = vmatpush1.msra.mxu0 0.0
        %683 = vmatprep.subr.mxu0 0.0
        %684 = vmatpush1.msra.mxu0 0.0
        %685 = vmatprep.subr.mxu0 0.0
        %686 = vmatpush1.msra.mxu0 0.0
        %687 = vmatprep.subr.mxu0 0.0
        %688 = vmatpush1.msra.mxu0 0.0
        %689 = vmatprep.subr.mxu0 0.0
        %690 = vmatpush1.msra.mxu0 0.0
        %691 = vmatprep.subr.mxu0 0.0
        %692 = vmatpush1.msra.mxu0 0.0
        %693 = vmatprep.subr.mxu0 0.0
        %694 = vmatpush1.msra.mxu0 0.0
        %695 = vmatprep.subr.mxu0 0.0
        %696 = vmatpush1.msra.mxu0 0.0
        %697 = vmatprep.mubr.f32.mxu0 0.0
        %698 = vmatmul.mubr.f32.gmra.mrb[0].mxu0 %v627
        %v699 = vpop.f32.mrb[0].mxu0
        %v700 = vadd.f32 0.0, %v699
        %v701 = vpop.f32.mrb[0].mxu0
        %v702 = vadd.f32 0.0, %v701
        %703 = vdwg.mxu0
        %v704 = vadd.f32 %v616, %v700
        %v705 = vadd.f32 %v618, %v702
        %v706 = vld [vmem:[%s387] sm:$0xf]
        %v707 = vunpack.c.l.bf16 %v706
        %s708 = scalar_lea.vmem %s4, 12
        %v709 = vld [vmem:[%s708] sm:$0xf]
        %v711 = vcombine.high %v707, %v707
        %v713 = vsel %vm460, %v709, 0
        %v715 = vsel %vm464, %v707, 0
        %v717 = vsel %vm464, %v711, 0
        %719 = vmatprep.subr.mxu0 %v717
        %720 = vmatpush1.msra.mxu0 %v715
        %721 = vmatprep.subr.mxu0 0.0
        %722 = vmatpush1.msra.mxu0 0.0
        %723 = vmatprep.subr.mxu0 0.0
        %724 = vmatpush1.msra.mxu0 0.0
        %725 = vmatprep.subr.mxu0 0.0
        %726 = vmatpush1.msra.mxu0 0.0
        %727 = vmatprep.subr.mxu0 0.0
        %728 = vmatpush1.msra.mxu0 0.0
        %729 = vmatprep.subr.mxu0 0.0
        %730 = vmatpush1.msra.mxu0 0.0
        %731 = vmatprep.subr.mxu0 0.0
        %732 = vmatpush1.msra.mxu0 0.0
        %733 = vmatprep.subr.mxu0 0.0
        %734 = vmatpush1.msra.mxu0 0.0
        %735 = vmatprep.subr.mxu0 0.0
        %736 = vmatpush1.msra.mxu0 0.0
        %737 = vmatprep.subr.mxu0 0.0
        %738 = vmatpush1.msra.mxu0 0.0
        %739 = vmatprep.subr.mxu0 0.0
        %740 = vmatpush1.msra.mxu0 0.0
        %741 = vmatprep.subr.mxu0 0.0
        %742 = vmatpush1.msra.mxu0 0.0
        %743 = vmatprep.subr.mxu0 0.0
        %744 = vmatpush1.msra.mxu0 0.0
        %745 = vmatprep.subr.mxu0 0.0
        %746 = vmatpush1.msra.mxu0 0.0
        %747 = vmatprep.subr.mxu0 0.0
        %748 = vmatpush1.msra.mxu0 0.0
        %749 = vmatprep.subr.mxu0 0.0
        %750 = vmatpush1.msra.mxu0 0.0
        %751 = vmatprep.subr.mxu0 0.0
        %752 = vmatpush1.msra.mxu0 0.0
        %753 = vmatprep.subr.mxu0 0.0
        %754 = vmatpush1.msra.mxu0 0.0
        %755 = vmatprep.subr.mxu0 0.0
        %756 = vmatpush1.msra.mxu0 0.0
        %757 = vmatprep.subr.mxu0 0.0
        %758 = vmatpush1.msra.mxu0 0.0
        %759 = vmatprep.subr.mxu0 0.0
        %760 = vmatpush1.msra.mxu0 0.0
        %761 = vmatprep.subr.mxu0 0.0
        %762 = vmatpush1.msra.mxu0 0.0
        %763 = vmatprep.subr.mxu0 0.0
        %764 = vmatpush1.msra.mxu0 0.0
        %765 = vmatprep.subr.mxu0 0.0
        %766 = vmatpush1.msra.mxu0 0.0
        %767 = vmatprep.subr.mxu0 0.0
        %768 = vmatpush1.msra.mxu0 0.0
        %769 = vmatprep.subr.mxu0 0.0
        %770 = vmatpush1.msra.mxu0 0.0
        %771 = vmatprep.subr.mxu0 0.0
        %772 = vmatpush1.msra.mxu0 0.0
        %773 = vmatprep.subr.mxu0 0.0
        %774 = vmatpush1.msra.mxu0 0.0
        %775 = vmatprep.subr.mxu0 0.0
        %776 = vmatpush1.msra.mxu0 0.0
        %777 = vmatprep.subr.mxu0 0.0
        %778 = vmatpush1.msra.mxu0 0.0
        %779 = vmatprep.subr.mxu0 0.0
        %780 = vmatpush1.msra.mxu0 0.0
        %781 = vmatprep.subr.mxu0 0.0
        %782 = vmatpush1.msra.mxu0 0.0
        %783 = vmatprep.mubr.f32.mxu0 0.0
        %784 = vmatmul.mubr.f32.gmra.mrb[0].mxu0 %v713
        %v785 = vpop.f32.mrb[0].mxu0
        %v786 = vadd.f32 0.0, %v785
        %v787 = vpop.f32.mrb[0].mxu0
        %v788 = vadd.f32 0.0, %v787
        %789 = vdwg.mxu0
        %v790 = vadd.f32 %v704, %v786
        %v791 = vadd.f32 %v705, %v788
        %vm792 = vcmp.gt.f32.partialorder %v790, 1.0
        %vm793 = vcmp.gt.f32.partialorder %v791, 1.0
        %v794 = vsel %vm792, 1, 0
        %v795 = vsel %vm793, 1, 0
        %v796 = vcvt.s32.f32 %v794
        %v797 = vcvt.s32.f32 %v795
        %v798 = vld [vmem:[%s5] sm:$0x7]
        %v799 = vld [vmem:[%s6] sm:$0x7]
        %801 = vset.pattern.permute.xlu0 0
        %802 = vperm.xlu0 %801, %v798
        %v803 = vpop.permute.xlu0 %802
        %v805 = vlaneseq
        %v806 = vshrl.u32 %v805, 7
        %v807 = vsub.s32 0, %v806
        %v808 = vrot.slane %v796, %v807
        %v809 = vlaneseq
        %v810 = vshrl.u32 %v809, 7
        %v811 = vsub.s32 0, %v810
        %v812 = vrot.slane %v797, %v811
        %v813 = vmul.f32 %v803, %v808
        %v814 = vmul.f32 %v803, %v812
        %816 = vset.pattern.permute.xlu0 0
        %817 = vperm.xlu0 %816, %v799
        %v818 = vpop.permute.xlu0 %817
        %v820 = vadd.f32 %v818, %v813
        %v821 = vadd.f32 %v818, %v814
        %822 = vset.pattern.permute.xlu0 1
        %823 = vperm.xlu0 %822, %v798
        %v824 = vpop.permute.xlu0 %823
        %v826 = vlaneseq
        %v827 = vshrl.u32 %v826, 7
        %v828 = vsub.s32 1, %v827
        %v829 = vrot.slane %v796, %v828
        %v830 = vlaneseq
        %v831 = vshrl.u32 %v830, 7
        %v832 = vsub.s32 1, %v831
        %v833 = vrot.slane %v797, %v832
        %v834 = vmul.f32 %v824, %v829
        %v835 = vmul.f32 %v824, %v833
        %v836 = vadd.f32 %v820, %v834
        %v837 = vadd.f32 %v821, %v835
        %838 = vset.pattern.permute.xlu0 2
        %839 = vperm.xlu0 %838, %v798
        %v840 = vpop.permute.xlu0 %839
        %v842 = vlaneseq
        %v843 = vshrl.u32 %v842, 7
        %v844 = vsub.s32 2, %v843
        %v845 = vrot.slane %v796, %v844
        %v846 = vlaneseq
        %v847 = vshrl.u32 %v846, 7
        %v848 = vsub.s32 2, %v847
        %v849 = vrot.slane %v797, %v848
        %v850 = vmul.f32 %v840, %v845
        %v851 = vmul.f32 %v840, %v849
        %v852 = vadd.f32 %v836, %v850
        %v853 = vadd.f32 %v837, %v851
        %854 = vset.pattern.permute.xlu0 3
        %855 = vperm.xlu0 %854, %v798
        %v856 = vpop.permute.xlu0 %855
        %v858 = vlaneseq
        %v859 = vshrl.u32 %v858, 7
        %v860 = vsub.s32 3, %v859
        %v861 = vrot.slane %v796, %v860
        %v862 = vlaneseq
        %v863 = vshrl.u32 %v862, 7
        %v864 = vsub.s32 3, %v863
        %v865 = vrot.slane %v797, %v864
        %v866 = vmul.f32 %v856, %v861
        %v867 = vmul.f32 %v856, %v865
        %v868 = vadd.f32 %v852, %v866
        %v869 = vadd.f32 %v853, %v867
        %vm870 = vcmp.gt.f32.partialorder %v868, 1.0
        %vm871 = vcmp.gt.f32.partialorder %v869, 1.0
        %v872 = vsel %vm870, 1, 0
        %v873 = vsel %vm871, 1, 0
        %v874 = vcvt.s32.f32 %v872
        %v875 = vcvt.s32.f32 %v873
        %v876 = vpack.c.bf16 %v874, %v874
        %v877 = vpack.c.bf16 %v875, %v875
        %v880 = vcombine.low %v876, %v877
        %v882 = vunpack.c.l.s4 1983009808
        %v883 = vunpack.c.0.s8 %v882
        %v884 = vlaneseq
        %v885 = vshrl.u32 %v884, 7
        %v886 = vsub.s32 %v883, %v885
        %v887 = vrot.slane %v880, %v886
        %vm889 = vcmask 1041408
        %vm890 = vsmask.f32 1280
        %vm891 = vmand %vm889, %vm890
        %vm892 = vcmask 1043458
        %vm893 = vsmask.f32 3328
        %vm894 = vmand %vm892, %vm893
        %vm895 = vmor %vm894, %vm891
        %v896 = vld [vmem:[%s449] sm:$0xf]
        %v897 = vsel %vm895, %v887, %v896
        %898 = vst [vmem:[%s449] sm:$0xf] %v897
        %s899 = smul.u32 2, %s32
        %p900 = scmp.lt.s32.totalorder %s31, 1
        %s901 = scalar_select %p900, %s31, 1
        %p902 = scmp.lt.s32.totalorder %s899, 1
        %s903 = scalar_select %p902, %s899, 1
        %s904 = smul.addr %s901, 2
        %s905 = sadd.s32 %s903, %s904
        %s906 = smul.addr %s905, 2
        %s907 = scalar_lea.vmem %s7, %s906
        // Predicated region
        $region65: #{tpu_custom_call.1} parent=47 // pred_check
          %p908 = pneg %p234
        $region66: #{tpu_custom_call.1} parent=47 // pred_check_branch
          %910 = sbr.rel (%p908) target = $region68
        $region67: #{tpu_custom_call.1} parent=47 // pred_region
          %s911 = smul.u32 2, %s32
        $region68: #{tpu_custom_call.1} parent=47 // pred_fallthru
          _
      $region48: #{tpu_custom_call.1} parent=5 // pred_fallthru
        _
      %p912 = scmp.le.s32.totalorder 2, %s22
      // Predicated region
      $region69: #{tpu_custom_call.1} parent=5 // pred_check
        %p913 = pneg %p912
      $region70: #{tpu_custom_call.1} parent=5 // pred_check_branch
        %915 = sbr.rel (%p913) target = $region72
      $region71: #{tpu_custom_call.1} parent=5 // pred_region
        %s916 = ssub.s32 %s22, 2
        // Predicated region
        $region73: #{tpu_custom_call.1} parent=71 // pred_check
          %p917 = pneg %p240
        $region74: #{tpu_custom_call.1} parent=71 // pred_check_branch
          %919 = sbr.rel (%p917) target = $region76
        $region75: #{tpu_custom_call.1} parent=71 // pred_region
          %s920 = smul.u32 2, %s34
          %p921 = scmp.lt.s32.totalorder %s33, 1
          %s922 = scalar_select %p921, %s33, 1
          %p923 = scmp.lt.s32.totalorder %s920, 1
          %s924 = scalar_select %p923, %s920, 1
          %s925 = smul.addr %s922, 2
          %s926 = sadd.s32 %s924, %s925
          %s927 = smul.addr %s926, 2
          %s928 = scalar_lea.vmem %s7, %s927
        $region76: #{tpu_custom_call.1} parent=71 // pred_fallthru
          _
      $region72: #{tpu_custom_call.1} parent=5 // pred_fallthru
        _
    $region6: #{tpu_custom_call.1} parent=1 // loop_footer
      %s26 = sadd.s32 1, %s22
    $region7: #{tpu_custom_call.1} parent=1 // loop_footer_branch
      %21 = sbr.rel target = $region3
    $region8: #{tpu_custom_call.1} parent=1 // loop_exit
      _
    %929 = vsyncpa [#allocation3], 1
    %s930 = scalar_lea.sflag [#allocation3], 1
    %931 = vsyncpa %s930, 1
    %932 = vsyncpa [#allocation5], 1
    %s933 = scalar_lea.sflag [#allocation5], 1
    %934 = vsyncpa %s933, 1
    %935 = vsyncpa [#allocation8], 1
    %s936 = scalar_lea.sflag [#allocation8], 1
    %937 = vsyncpa %s936, 1

</llo_original>
